<compile_context>
chip_gen: v7x
topology: tpu7x:2x2x1
jax: 0.10.0
libtpu: 0.0.40
codegen_flags: <defaults>
</compile_context>

<pallas_src>
import functools

import jax
import jax.numpy as jnp
from jax import lax
from jax.experimental import pallas as pl
from jax.experimental.pallas import tpu as pltpu


def _round_up(a, b):
    return (a + b - 1) // b * b


def _vmem_budget_bytes(T, D, H):
    f32 = 4
    need = (T * T * f32                                   # resident tri mask
            + 2 * 2 * T * D * f32                         # double-buffered x
            + 2 * 2 * T * 2 * H * f32                     # double-buffered out
            + (2 * D * 3 * H + 3 * H + H * H + H) * f32   # resident weights
            + 8 * T * 3 * H * f32)                        # gates/act temps
    # 2x headroom, clamped to [16 MiB, 48 MiB] (v7x-safe).
    return int(min(max(2 * need, 16 * 1024 * 1024), 48 * 1024 * 1024))


def _first_module_kernel(mask_ref, x_ref, w1_ref, b1_ref, w2_ref, b2_ref,
                         out_ref, carry_ref, *, hidden_size):
    """Processes one sequence tile.

    mask_ref : (T, T) f32   strictly-lower-triangular, VMEM-resident
    x_ref    : (T, D) f32   current sequence tile
    w1_ref   : (2D, 3H)     gate weights, pre-transposed (bf16 or f32)
    b1_ref   : (1, 3H) f32
    w2_ref   : (H, H)       second linear, pre-transposed (bf16 or f32)
    b2_ref   : (1, H) f32
    out_ref  : (T, 2H) f32  lane-packed [fg | hr]
    carry_ref: (1, D) f32   running exclusive-prefix-sum carry (scratch)
    """
    H = hidden_size

    @pl.when(pl.program_id(0) == 0)
    def _init():
        carry_ref[...] = jnp.zeros_like(carry_ref)

    x = x_ref[...]                                           # (T, D) f32

    # Exclusive prefix sum for this tile: local strictly-lower-triangular
    # matmul (MXU, f32) plus the f32 carry from previous tiles.
    s = jnp.dot(mask_ref[...], x, preferred_element_type=jnp.float32)
    s = s + carry_ref[...]
    carry_ref[...] = carry_ref[...] + jnp.sum(x, axis=0, keepdims=True)

    # Fused gate matmul: v = [x | s] (lane concat), one K=2D dot.
    mm_dtype = w1_ref.dtype
    v = jnp.concatenate([x, s], axis=1).astype(mm_dtype)     # (T, 2D)
    gates = jnp.dot(v, w1_ref[...],
                    preferred_element_type=jnp.float32) + b1_ref[...]  # (T,3H)

    ig = jax.nn.sigmoid(gates[:, 0 * H:1 * H])
    fg = jax.nn.sigmoid(gates[:, 1 * H:2 * H])
    h = jnp.tanh(gates[:, 2 * H:3 * H])

    h2 = jnp.dot(h.astype(mm_dtype), w2_ref[...],
                 preferred_element_type=jnp.float32) + b2_ref[...]     # (T, H)

    # Single lane-dense store: [fg | hr].
    out_ref[...] = jnp.concatenate([fg, h2 * ig],
                                   axis=1).astype(out_ref.dtype)


def first_module_forward(x, w1, b1, w2, b2, *, seq_tile=512,
                         matmul_dtype=jnp.bfloat16):
    """x: (seq, D) f32.  w1: (3H, 2D), b1: (3H,), w2: (H, H), b2: (H,)
    (PyTorch nn.Linear layout).  Returns (fg, hr), each (seq, H) f32.

    seq_tile: sequence tile size; 512 fits all generations (v7x 64 MiB VMEM),
    v5e/v6e (128 MiB VMEM) can use up to ~2048 to amortize per-step overhead.
    """
    S, D = x.shape
    H3, D2 = w1.shape
    assert D2 == 2 * D
    H = H3 // 3

    # Pick a tile that is a multiple of 8 sublanes; pad S to a multiple of it.
    T = min(seq_tile, _round_up(S, 8))
    S_pad = _round_up(S, T)
    if S_pad != S:
        x = jnp.pad(x, ((0, S_pad - S), (0, 0)))
    grid = (S_pad // T,)

    # Weights pre-transposed to (in, out); biases stay f32 (added after the
    # f32-accumulated matmul).
    w1t = w1.T.astype(matmul_dtype)                      # (2D, 3H)
    w2t = w2.T.astype(matmul_dtype)                      # (H, H)
    b1_2d = b1.reshape(1, H3).astype(jnp.float32)
    b2_2d = b2.reshape(1, H).astype(jnp.float32)

    # Strictly-lower-triangular mask, built once, VMEM-resident across tiles.
    row = lax.broadcasted_iota(jnp.int32, (T, T), 0)
    col = lax.broadcasted_iota(jnp.int32, (T, T), 1)
    mask = (row > col).astype(jnp.float32)

    def const_spec(shape):
        return pl.BlockSpec(shape, lambda i: (0, 0))

    kernel = functools.partial(_first_module_kernel, hidden_size=H)

    out = pl.pallas_call(
        kernel,
        out_shape=jax.ShapeDtypeStruct((S_pad, 2 * H), jnp.float32),
        grid_spec=pltpu.PrefetchScalarGridSpec(
            num_scalar_prefetch=0,
            grid=grid,
            in_specs=[
                const_spec((T, T)),                         # triangular mask
                pl.BlockSpec((T, D), lambda i: (i, 0)),     # x tile
                const_spec((2 * D, H3)),                    # w1t (resident)
                const_spec((1, H3)),                        # b1
                const_spec((H, H)),                         # w2t (resident)
                const_spec((1, H)),                         # b2
            ],
            out_specs=pl.BlockSpec((T, 2 * H), lambda i: (i, 0)),
            scratch_shapes=[pltpu.VMEM((1, D), jnp.float32)],   # prefix carry
        ),
        compiler_params=pltpu.CompilerParams(
            dimension_semantics=("arbitrary",),             # sequential carry
            vmem_limit_bytes=_vmem_budget_bytes(T, D, H),
        ),
    )(mask, x, w1t, b1_2d, w2t, b2_2d)

    fg = out[:S, :H]
    hr = out[:S, H:]
    return fg, hr


def first_module_reference(x, w1, b1, w2, b2, matmul_dtype=jnp.float32):
    """Pure-JAX reference mirroring the PyTorch forward (optionally with the
    same bf16 matmul-input rounding as the kernel)."""
    s = jnp.cumsum(x, axis=0) - x                           # exclusive scan
    v = jnp.concatenate([x, s], axis=1).astype(matmul_dtype)
    gates = jnp.dot(v, w1.T.astype(matmul_dtype),
                    preferred_element_type=jnp.float32) + b1
    H = w2.shape[0]
    ig = jax.nn.sigmoid(gates[:, :H])
    fg = jax.nn.sigmoid(gates[:, H:2 * H])
    h = jnp.tanh(gates[:, 2 * H:])
    h2 = jnp.dot(h.astype(matmul_dtype), w2.T.astype(matmul_dtype),
                 preferred_element_type=jnp.float32) + b2
    return fg, h2 * ig


if __name__ == "__main__":
    seq_length = 8
    input_size = 16
    hidden_size = 32

    key = jax.random.PRNGKey(0)
    kx, k1, kb1, k2, kb2 = jax.random.split(key, 5)

    std = 1.0 / jnp.sqrt(hidden_size)
    x = jax.random.normal(kx, (seq_length, input_size), dtype=jnp.float32)
    w1 = jax.random.uniform(k1, (3 * hidden_size, 2 * input_size),
                            minval=-std, maxval=std, dtype=jnp.float32)
    b1 = jax.random.uniform(kb1, (3 * hidden_size,),
                            minval=-std, maxval=std, dtype=jnp.float32)
    w2 = jax.random.uniform(k2, (hidden_size, hidden_size),
                            minval=-std, maxval=std, dtype=jnp.float32)
    b2 = jax.random.uniform(kb2, (hidden_size,),
                            minval=-std, maxval=std, dtype=jnp.float32)

    # 1) Exact-f32 path: tight check against the reference.
    fg32, hr32 = first_module_forward(x, w1, b1, w2, b2,
                                      matmul_dtype=jnp.float32)
    jax.block_until_ready((fg32, hr32))
    fg_ref, hr_ref = first_module_reference(x, w1, b1, w2, b2)
    assert fg32.shape == (seq_length, hidden_size)
    assert hr32.shape == (seq_length, hidden_size)
    assert jnp.allclose(fg32, fg_ref, rtol=1e-5, atol=1e-5)
    assert jnp.allclose(hr32, hr_ref, rtol=1e-5, atol=1e-5)

    # 2) Default bf16-MXU path: compare against a reference that applies the
    #    same bf16 rounding to the matmul inputs (scan stays f32 in both).
    fgb, hrb = first_module_forward(x, w1, b1, w2, b2)
    jax.block_until_ready((fgb, hrb))
    fg_refb, hr_refb = first_module_reference(x, w1, b1, w2, b2,
                                              matmul_dtype=jnp.bfloat16)
    assert jnp.allclose(fgb, fg_refb, rtol=1e-2, atol=1e-2)
    assert jnp.allclose(hrb, hr_refb, rtol=1e-2, atol=1e-2)

    # 3) Multi-tile path: exercises the carried prefix-sum scratch across
    #    several grid steps (f32 matmuls for a tight check).
    S_long = 1024
    x_long = jax.random.normal(jax.random.PRNGKey(1), (S_long, input_size),
                               dtype=jnp.float32)
    fgl, hrl = first_module_forward(x_long, w1, b1, w2, b2, seq_tile=256,
                                    matmul_dtype=jnp.float32)
    jax.block_until_ready((fgl, hrl))
    fg_refl, hr_refl = first_module_reference(x_long, w1, b1, w2, b2)
    assert fgl.shape == (S_long, hidden_size)
    assert jnp.allclose(fgl, fg_refl, rtol=1e-3, atol=1e-3)
    assert jnp.allclose(hrl, hr_refl, rtol=1e-3, atol=1e-3)

    # TODO(synk): if the real workload carries a batch/head dimension, add it
    # as a leading "parallel" grid axis so the v7x second TensorCore is used
    # and the MXU K/N dimensions reach >=128.

    print("KERNEL_OK")
</pallas_src>

<mosaic_0001>
module attributes {stable_mosaic.version = 11 : i64} {
  func.func @_first_module_kernel(%arg0: i32, %arg1: memref<8x8xf32, #tpu.memory_space<vmem>>, %arg2: memref<8x16xf32, #tpu.memory_space<vmem>>, %arg3: memref<32x96xf32, #tpu.memory_space<vmem>>, %arg4: memref<1x96xf32, #tpu.memory_space<vmem>>, %arg5: memref<32x32xf32, #tpu.memory_space<vmem>>, %arg6: memref<1x32xf32, #tpu.memory_space<vmem>>, %arg7: memref<8x64xf32, #tpu.memory_space<vmem>>, %arg8: memref<1x16xf32, #tpu.memory_space<vmem>>) attributes {dimension_semantics = [#tpu.dimension_semantics<arbitrary>], iteration_bounds = array<i64: 1>, scalar_prefetch = 0 : i64, scratch_operands = 1 : i64, tpu.core_type = #tpu.core_type<tc>, window_params = [{pipeline_mode = #tpu.pipeline_mode<synchronous>, transform_indices = @transform_0, window_bounds = array<i64: 8, 8>}, {transform_indices = @transform_1, window_bounds = array<i64: 8, 16>}, {pipeline_mode = #tpu.pipeline_mode<synchronous>, transform_indices = @transform_2, window_bounds = array<i64: 32, 96>}, {pipeline_mode = #tpu.pipeline_mode<synchronous>, transform_indices = @transform_3, window_bounds = array<i64: 1, 96>}, {pipeline_mode = #tpu.pipeline_mode<synchronous>, transform_indices = @transform_4, window_bounds = array<i64: 32, 32>}, {pipeline_mode = #tpu.pipeline_mode<synchronous>, transform_indices = @transform_5, window_bounds = array<i64: 1, 32>}, {transform_indices = @transform_6, window_bounds = array<i64: 8, 64>}]} {
    %c0_i32 = arith.constant 0 : i32
    %0 = arith.cmpi eq, %arg0, %c0_i32 : i32
    %1 = arith.extui %0 : i1 to i32
    %c0_i32_0 = arith.constant 0 : i32
    %2 = arith.cmpi ne, %1, %c0_i32_0 : i32
    scf.if %2 {
      %cst_25 = arith.constant 0.000000e+00 : f32
      %42 = vector.broadcast %cst_25 : f32 to vector<1x16xf32>
      %c0_26 = arith.constant 0 : index
      %c0_27 = arith.constant 0 : index
      %43 = vector.load %arg8[%c0_26, %c0_27] : memref<1x16xf32, #tpu.memory_space<vmem>>, vector<1x16xf32>
      tpu.vector_store %arg8[%c0_26, %c0_27], %42 {strides = array<i32>} : memref<1x16xf32, #tpu.memory_space<vmem>>, vector<1x16xf32>,
    } else {
    }
    %c0 = arith.constant 0 : index
    %c0_1 = arith.constant 0 : index
    %3 = vector.load %arg2[%c0, %c0_1] : memref<8x16xf32, #tpu.memory_space<vmem>>, vector<8x16xf32>
    %c0_2 = arith.constant 0 : index
    %c0_3 = arith.constant 0 : index
    %4 = vector.load %arg1[%c0_2, %c0_3] : memref<8x8xf32, #tpu.memory_space<vmem>>, vector<8x8xf32>
    %cst = arith.constant dense<0.000000e+00> : vector<8x16xf32>
    %5 = tpu.matmul %4, %3, %cst {dimension_numbers = #tpu.dot_dimension_numbers<[1], [0], [0], [1], [0, 0, 1, 1], [], []>} : vector<8x8xf32>, vector<8x16xf32>, vector<8x16xf32> -> vector<8x16xf32>
    %c0_4 = arith.constant 0 : index
    %c0_5 = arith.constant 0 : index
    %6 = vector.load %arg8[%c0_4, %c0_5] : memref<1x16xf32, #tpu.memory_space<vmem>>, vector<1x16xf32>
    %7 = vector.broadcast %6 : vector<1x16xf32> to vector<8x16xf32>
    %8 = arith.addf %5, %7 : vector<8x16xf32>
    %c0_6 = arith.constant 0 : index
    %c0_7 = arith.constant 0 : index
    %9 = vector.load %arg8[%c0_6, %c0_7] : memref<1x16xf32, #tpu.memory_space<vmem>>, vector<1x16xf32>
    %cst_8 = arith.constant dense<0.000000e+00> : vector<16xf32>
    %10 = vector.multi_reduction <add>, %3, %cst_8 [0] : vector<8x16xf32> to vector<16xf32>
    %11 = vector.shape_cast %10 : vector<16xf32> to vector<1x16xf32>
    %12 = arith.addf %9, %11 : vector<1x16xf32>
    %c0_9 = arith.constant 0 : index
    %c0_10 = arith.constant 0 : index
    %13 = vector.load %arg8[%c0_9, %c0_10] : memref<1x16xf32, #tpu.memory_space<vmem>>, vector<1x16xf32>
    tpu.vector_store %arg8[%c0_9, %c0_10], %12 {strides = array<i32>} : memref<1x16xf32, #tpu.memory_space<vmem>>, vector<1x16xf32>,
    %14 = tpu.concatenate %3, %8 in 1 : vector<8x16xf32>, vector<8x16xf32> -> vector<8x32xf32>
    %c0_11 = arith.constant 0 : index
    %c0_12 = arith.constant 0 : index
    %15 = vector.load %arg3[%c0_11, %c0_12] : memref<32x96xf32, #tpu.memory_space<vmem>>, vector<32x96xf32>
    %cst_13 = arith.constant dense<0.000000e+00> : vector<8x96xf32>
    %16 = tpu.matmul %14, %15, %cst_13 {dimension_numbers = #tpu.dot_dimension_numbers<[1], [0], [0], [1], [0, 0, 1, 1], [], []>} : vector<8x32xf32>, vector<32x96xf32>, vector<8x96xf32> -> vector<8x96xf32>
    %c0_14 = arith.constant 0 : index
    %c0_15 = arith.constant 0 : index
    %17 = vector.load %arg4[%c0_14, %c0_15] : memref<1x96xf32, #tpu.memory_space<vmem>>, vector<1x96xf32>
    %18 = vector.broadcast %17 : vector<1x96xf32> to vector<8x96xf32>
    %19 = arith.addf %16, %18 : vector<8x96xf32>
    %20 = vector.extract_strided_slice %19 {offsets = [0, 0], sizes = [8, 32], strides = [1, 1]} : vector<8x96xf32> to vector<8x32xf32>
    %21 = arith.negf %20 : vector<8x32xf32>
    %22 = math.exp %21 : vector<8x32xf32>
    %cst_16 = arith.constant 1.000000e+00 : f32
    %23 = vector.broadcast %cst_16 : f32 to vector<8x32xf32>
    %24 = arith.addf %23, %22 : vector<8x32xf32>
    %25 = arith.divf %23, %24 : vector<8x32xf32>
    %26 = vector.extract_strided_slice %19 {offsets = [0, 32], sizes = [8, 32], strides = [1, 1]} : vector<8x96xf32> to vector<8x32xf32>
    %27 = arith.negf %26 : vector<8x32xf32>
    %28 = math.exp %27 : vector<8x32xf32>
    %cst_17 = arith.constant 1.000000e+00 : f32
    %29 = vector.broadcast %cst_17 : f32 to vector<8x32xf32>
    %30 = arith.addf %29, %28 : vector<8x32xf32>
    %31 = arith.divf %29, %30 : vector<8x32xf32>
    %32 = vector.extract_strided_slice %19 {offsets = [0, 64], sizes = [8, 32], strides = [1, 1]} : vector<8x96xf32> to vector<8x32xf32>
    %33 = math.tanh %32 : vector<8x32xf32>
    %c0_18 = arith.constant 0 : index
    %c0_19 = arith.constant 0 : index
    %34 = vector.load %arg5[%c0_18, %c0_19] : memref<32x32xf32, #tpu.memory_space<vmem>>, vector<32x32xf32>
    %cst_20 = arith.constant dense<0.000000e+00> : vector<8x32xf32>
    %35 = tpu.matmul %33, %34, %cst_20 {dimension_numbers = #tpu.dot_dimension_numbers<[1], [0], [0], [1], [0, 0, 1, 1], [], []>} : vector<8x32xf32>, vector<32x32xf32>, vector<8x32xf32> -> vector<8x32xf32>
    %c0_21 = arith.constant 0 : index
    %c0_22 = arith.constant 0 : index
    %36 = vector.load %arg6[%c0_21, %c0_22] : memref<1x32xf32, #tpu.memory_space<vmem>>, vector<1x32xf32>
    %37 = vector.broadcast %36 : vector<1x32xf32> to vector<8x32xf32>
    %38 = arith.addf %35, %37 : vector<8x32xf32>
    %39 = arith.mulf %38, %25 : vector<8x32xf32>
    %40 = tpu.concatenate %31, %39 in 1 : vector<8x32xf32>, vector<8x32xf32> -> vector<8x64xf32>
    %c0_23 = arith.constant 0 : index
    %c0_24 = arith.constant 0 : index
    %41 = vector.load %arg7[%c0_23, %c0_24] : memref<8x64xf32, #tpu.memory_space<vmem>>, vector<8x64xf32>
    tpu.vector_store %arg7[%c0_23, %c0_24], %40 {strides = array<i32>} : memref<8x64xf32, #tpu.memory_space<vmem>>, vector<8x64xf32>,
    return
  }
  func.func @transform_0(%arg0: i32) -> (i32, i32) {
    %c0_i32 = arith.constant 0 : i32
    %c0_i32_0 = arith.constant 0 : i32
    %c0_i32_1 = arith.constant 0 : i32
    return %c0_i32, %c0_i32_0 : i32, i32
  }
  func.func @transform_1(%arg0: i32) -> (i32, i32) {
    %c0_i32 = arith.constant 0 : i32
    %c0_i32_0 = arith.constant 0 : i32
    return %arg0, %c0_i32 : i32, i32
  }
  func.func @transform_2(%arg0: i32) -> (i32, i32) {
    %c0_i32 = arith.constant 0 : i32
    %c0_i32_0 = arith.constant 0 : i32
    %c0_i32_1 = arith.constant 0 : i32
    return %c0_i32, %c0_i32_0 : i32, i32
  }
  func.func @transform_3(%arg0: i32) -> (i32, i32) {
    %c0_i32 = arith.constant 0 : i32
    %c0_i32_0 = arith.constant 0 : i32
    %c0_i32_1 = arith.constant 0 : i32
    return %c0_i32, %c0_i32_0 : i32, i32
  }
  func.func @transform_4(%arg0: i32) -> (i32, i32) {
    %c0_i32 = arith.constant 0 : i32
    %c0_i32_0 = arith.constant 0 : i32
    %c0_i32_1 = arith.constant 0 : i32
    return %c0_i32, %c0_i32_0 : i32, i32
  }
  func.func @transform_5(%arg0: i32) -> (i32, i32) {
    %c0_i32 = arith.constant 0 : i32
    %c0_i32_0 = arith.constant 0 : i32
    %c0_i32_1 = arith.constant 0 : i32
    return %c0_i32, %c0_i32_0 : i32, i32
  }
  func.func @transform_6(%arg0: i32) -> (i32, i32) {
    %c0_i32 = arith.constant 0 : i32
    %c0_i32_0 = arith.constant 0 : i32
    return %arg0, %c0_i32 : i32, i32
  }
}

</mosaic_0001>

<llo_original>
// kernel: tpu_custom_call.1
$region0: #{tpu_custom_call.1}
  #allocation0 [shape = 'u32[]', space=smem, size = 0x4, offset = 0x4, fixed_abs, tag = 'smem constant byte address 0x4 - core index']
  #allocation1 [shape = 'u32[144,128]{1,0:T(1,128)}', space=vmem, size = 0x12000, scoped, tag = 'internal scratch']
  #allocation2 [shape = 'f32[1,16]{1,0:T(1,128)}', space=vmem, size = 0x200, scoped, tag = 'scratch operand']
  %s0 = inlined_call_operand.hbm [shape: f32[8,8], index: 0, kind: input, shape index: {}]
  %s1 = inlined_call_operand.hbm [shape: f32[8,16], index: 1, kind: input, shape index: {}]
  %s2 = inlined_call_operand.hbm [shape: f32[32,96], index: 2, kind: input, shape index: {}]
  %s3 = inlined_call_operand.vmem [shape: f32[1,96], index: 3, kind: input, shape index: {}]
  %s4 = inlined_call_operand.hbm [shape: f32[32,32], index: 4, kind: input, shape index: {}]
  %s5 = inlined_call_operand.vmem [shape: f32[1,32], index: 5, kind: input, shape index: {}]
  %s6 = inlined_call_operand.hbm [shape: f32[8,64], index: 6, kind: output, shape index: {}]
  %s7 = sld [smem:[#allocation0]]
  $region54: #{tpu_custom_call.1} parent=0
    _
  %s9 = ssub.s32 1, %s7
  %s10 = scalar_select 0, %s9, %s7
  $region1: #{tpu_custom_call.1} parent=0
    #allocation3 [shape = 'u8[4096]{0}', space=vmem, size = 0x1000, scoped, tag = 'input window, operand 0, single buffered']
    #allocation4 [shape = 's32[1]{0}', space=sflag, size = 0x4, scoped, tag = 'scoped memory for tpu_custom_call.1']
    #allocation5 [shape = 's32[1]{0}', space=sflag, size = 0x4, scoped, tag = 'scoped memory for tpu_custom_call.1']
    #allocation6 [shape = 'u8[4096]{0}', space=vmem, size = 0x1000, scoped, tag = 'input window, operand 1, single buffered']
    #allocation7 [shape = 's32[1]{0}', space=sflag, size = 0x4, scoped, tag = 'scoped memory for tpu_custom_call.1']
    #allocation8 [shape = 'u8[16384]{0}', space=vmem, size = 0x4000, scoped, tag = 'input window, operand 2, single buffered']
    #allocation9 [shape = 'u8[16384]{0}', space=vmem, size = 0x4000, scoped, tag = 'input window, operand 4, single buffered']
    #allocation10 [shape = 's32[1]{0}', space=sflag, size = 0x4, scoped, tag = 'scoped memory for tpu_custom_call.1']
    #allocation11 [shape = 'u8[4096]{0}', space=vmem, size = 0x1000, scoped, tag = 'output window, operand 0, single buffered']
    %11 = vsyncpa [#allocation4], 0
    %12 = vsyncpa [#allocation7], 0
    %13 = vsyncpa [#allocation10], 0
    %14 = vsyncpa [#allocation5], 0
    // Predicated region
    $region2: #{tpu_custom_call.1} parent=1 // pred_check
      _
    $region3: #{tpu_custom_call.1} parent=1 // pred_check_branch
      %16 = sbr.rel (0) target = $region5
    $region4: #{tpu_custom_call.1} parent=1 // pred_region
      %s18 = ssub.s32 128, 128
      %19 = vsyncadd [#allocation4], %s18
      %s21 = sshll.u32 [#allocation3], 4
      %s22 = int_to_ptr.vmem [resolvable:$true] %s21
      %24 = dma.hbm_to_vmem [thread:$0]  %s0, 128, %s22, [#allocation4]
    $region5: #{tpu_custom_call.1} parent=1 // pred_fallthru
      _
    // Predicated region
    $region6: #{tpu_custom_call.1} parent=1 // pred_check
      _
    $region7: #{tpu_custom_call.1} parent=1 // pred_check_branch
      %26 = sbr.rel (0) target = $region9
    $region8: #{tpu_custom_call.1} parent=1 // pred_region
      %s28 = ssub.s32 128, 128
      %29 = vsyncadd [#allocation7], %s28
      %s31 = sshll.u32 [#allocation6], 4
      %s32 = int_to_ptr.vmem [resolvable:$true] %s31
      %34 = dma.hbm_to_vmem [thread:$0]  %s1, 128, %s32, [#allocation7]
    $region9: #{tpu_custom_call.1} parent=1 // pred_fallthru
      _
    // Predicated region
    $region10: #{tpu_custom_call.1} parent=1 // pred_check
      _
    $region11: #{tpu_custom_call.1} parent=1 // pred_check_branch
      %36 = sbr.rel (0) target = $region13
    $region12: #{tpu_custom_call.1} parent=1 // pred_region
      %s38 = ssub.s32 512, 512
      %39 = vsyncadd [#allocation7], %s38
      %s40 = sshll.u32 [#allocation8], 4
      %s41 = int_to_ptr.vmem [resolvable:$true] %s40
      %46 = dma.hbm_to_vmem [thread:$0]  %s2, 512, %s41, [#allocation7], 128, 128, 8
    $region13: #{tpu_custom_call.1} parent=1 // pred_fallthru
      _
    // Predicated region
    $region14: #{tpu_custom_call.1} parent=1 // pred_check
      _
    $region15: #{tpu_custom_call.1} parent=1 // pred_check_branch
      %48 = sbr.rel (0) target = $region17
    $region16: #{tpu_custom_call.1} parent=1 // pred_region
      _
    $region17: #{tpu_custom_call.1} parent=1 // pred_fallthru
      _
    // Predicated region
    $region18: #{tpu_custom_call.1} parent=1 // pred_check
      _
    $region19: #{tpu_custom_call.1} parent=1 // pred_check_branch
      %50 = sbr.rel (0) target = $region21
    $region20: #{tpu_custom_call.1} parent=1 // pred_region
      %s52 = ssub.s32 512, 512
      %53 = vsyncadd [#allocation10], %s52
      %s54 = sshll.u32 [#allocation9], 4
      %s55 = int_to_ptr.vmem [resolvable:$true] %s54
      %60 = dma.hbm_to_vmem [thread:$0]  %s4, 512, %s55, [#allocation10], 128, 128, 8
    $region21: #{tpu_custom_call.1} parent=1 // pred_fallthru
      _
    // Predicated region
    $region22: #{tpu_custom_call.1} parent=1 // pred_check
      _
    $region23: #{tpu_custom_call.1} parent=1 // pred_check_branch
      %62 = sbr.rel (0) target = $region25
    $region24: #{tpu_custom_call.1} parent=1 // pred_region
      _
    $region25: #{tpu_custom_call.1} parent=1 // pred_fallthru
      _
    // Predicated region
    $region26: #{tpu_custom_call.1} parent=1 // pred_check
      _
    $region27: #{tpu_custom_call.1} parent=1 // pred_check_branch
      %64 = sbr.rel (0) target = $region29
    $region28: #{tpu_custom_call.1} parent=1 // pred_region
      %65 = dma.done [#allocation4], 128
    $region29: #{tpu_custom_call.1} parent=1 // pred_fallthru
      _
    // Predicated region
    $region30: #{tpu_custom_call.1} parent=1 // pred_check
      _
    $region31: #{tpu_custom_call.1} parent=1 // pred_check_branch
      %67 = sbr.rel (0) target = $region33
    $region32: #{tpu_custom_call.1} parent=1 // pred_region
      %68 = dma.done [#allocation7], 128
    $region33: #{tpu_custom_call.1} parent=1 // pred_fallthru
      _
    // Predicated region
    $region34: #{tpu_custom_call.1} parent=1 // pred_check
      _
    $region35: #{tpu_custom_call.1} parent=1 // pred_check_branch
      %70 = sbr.rel (0) target = $region37
    $region36: #{tpu_custom_call.1} parent=1 // pred_region
      %71 = dma.done [#allocation7], 512
    $region37: #{tpu_custom_call.1} parent=1 // pred_fallthru
      _
    // Predicated region
    $region38: #{tpu_custom_call.1} parent=1 // pred_check
      _
    $region39: #{tpu_custom_call.1} parent=1 // pred_check_branch
      %73 = sbr.rel (0) target = $region41
    $region40: #{tpu_custom_call.1} parent=1 // pred_region
      %74 = dma.done [#allocation10], 512
    $region41: #{tpu_custom_call.1} parent=1 // pred_fallthru
      _
    %p75 = scmp.eq.s32.totalorder 0, 0
    // Predicated region
    $region42: #{tpu_custom_call.1} parent=1 // pred_check
      %p76 = pneg %p75
    $region43: #{tpu_custom_call.1} parent=1 // pred_check_branch
      %78 = sbr.rel (%p76) target = $region45
    $region44: #{tpu_custom_call.1} parent=1 // pred_region
      %vm79 = vcmask 122880
      %80 = vst.msk [vmem:[#allocation2] sm:$0x1] %vm79, 0.0
    $region45: #{tpu_custom_call.1} parent=1 // pred_fallthru
      _
    %v81 = vld [vmem:[#allocation6] sm:$0xff]
    %v82 = vld [vmem:[#allocation3] sm:$0xff]
    %v83 = vld [vmem:[#allocation2] sm:$0x1]
    %v85 = vlaneseq
    %v86 = vshrl.u32 %v85, 7
    %v87 = vsub.s32 0, %v86
    %v88 = vrot.slane %v83, %v87
    %vm90 = vcmask 64512
    %v92 = vsel %vm90, %v82, 0
    %94 = vmatprep.subr.mxu0 0.0
    %95 = vmatpush1.msra.mxu0 %v81
    %96 = vmatprep.subr.mxu0 0.0
    %97 = vmatpush1.msra.mxu0 0.0
    %98 = vmatprep.subr.mxu0 0.0
    %99 = vmatpush1.msra.mxu0 0.0
    %100 = vmatprep.subr.mxu0 0.0
    %101 = vmatpush1.msra.mxu0 0.0
    %102 = vmatprep.subr.mxu0 0.0
    %103 = vmatpush1.msra.mxu0 0.0
    %104 = vmatprep.subr.mxu0 0.0
    %105 = vmatpush1.msra.mxu0 0.0
    %106 = vmatprep.subr.mxu0 0.0
    %107 = vmatpush1.msra.mxu0 0.0
    %108 = vmatprep.subr.mxu0 0.0
    %109 = vmatpush1.msra.mxu0 0.0
    %110 = vmatprep.subr.mxu0 0.0
    %111 = vmatpush1.msra.mxu0 0.0
    %112 = vmatprep.subr.mxu0 0.0
    %113 = vmatpush1.msra.mxu0 0.0
    %114 = vmatprep.subr.mxu0 0.0
    %115 = vmatpush1.msra.mxu0 0.0
    %116 = vmatprep.subr.mxu0 0.0
    %117 = vmatpush1.msra.mxu0 0.0
    %118 = vmatprep.subr.mxu0 0.0
    %119 = vmatpush1.msra.mxu0 0.0
    %120 = vmatprep.subr.mxu0 0.0
    %121 = vmatpush1.msra.mxu0 0.0
    %122 = vmatprep.subr.mxu0 0.0
    %123 = vmatpush1.msra.mxu0 0.0
    %124 = vmatprep.subr.mxu0 0.0
    %125 = vmatpush1.msra.mxu0 0.0
    %126 = vmatprep.subr.mxu0 0.0
    %127 = vmatpush1.msra.mxu0 0.0
    %128 = vmatprep.subr.mxu0 0.0
    %129 = vmatpush1.msra.mxu0 0.0
    %130 = vmatprep.subr.mxu0 0.0
    %131 = vmatpush1.msra.mxu0 0.0
    %132 = vmatprep.subr.mxu0 0.0
    %133 = vmatpush1.msra.mxu0 0.0
    %134 = vmatprep.subr.mxu0 0.0
    %135 = vmatpush1.msra.mxu0 0.0
    %136 = vmatprep.subr.mxu0 0.0
    %137 = vmatpush1.msra.mxu0 0.0
    %138 = vmatprep.subr.mxu0 0.0
    %139 = vmatpush1.msra.mxu0 0.0
    %140 = vmatprep.subr.mxu0 0.0
    %141 = vmatpush1.msra.mxu0 0.0
    %142 = vmatprep.subr.mxu0 0.0
    %143 = vmatpush1.msra.mxu0 0.0
    %144 = vmatprep.subr.mxu0 0.0
    %145 = vmatpush1.msra.mxu0 0.0
    %146 = vmatprep.subr.mxu0 0.0
    %147 = vmatpush1.msra.mxu0 0.0
    %148 = vmatprep.subr.mxu0 0.0
    %149 = vmatpush1.msra.mxu0 0.0
    %150 = vmatprep.subr.mxu0 0.0
    %151 = vmatpush1.msra.mxu0 0.0
    %152 = vmatprep.subr.mxu0 0.0
    %153 = vmatpush1.msra.mxu0 0.0
    %154 = vmatprep.subr.mxu0 0.0
    %155 = vmatpush1.msra.mxu0 0.0
    %156 = vmatprep.subr.mxu0 0.0
    %157 = vmatpush1.msra.mxu0 0.0
    %158 = vmatprep.mubr.f32.mxu0 0.0
    %159 = vmatmul.mubr.f32.gmra.mrb[0].mxu0 %v92
    %v160 = vpop.f32.mrb[0].mxu0
    %v161 = vadd.f32 %v88, %v160
    %v162 = vpop.f32.mrb[0].mxu0
    %163 = vdwg.mxu0
    %vm164 = vcmask 130048
    %v165 = vsel %vm164, %v81, 0.0
    %v166 = vrot.slane %v165, 4
    %v167 = vadd.f32 %v165, %v166
    %v168 = vrot.slane %v167, 2
    %v169 = vadd.f32 %v167, %v168
    %v170 = vrot.slane %v169, 1
    %v171 = vadd.f32 %v169, %v170
    %v172 = vadd.f32 %v83, %v171
    %vm173 = vcmask 122880
    %174 = vst.msk [vmem:[#allocation2] sm:$0x1] %vm173, %v172
    %176 = vrot.lane.b32.xlu0 %v161, 16
    %v177 = vpop.permute.xlu0 %176
    %v179 = vsel %vm164, %v81, %v177
    %v180 = vld [vmem:[#allocation8] sm:$0xff]
    %v181 = vld [vmem:[#allocation8 + $0x8] sm:$0xff]
    %v182 = vld [vmem:[#allocation8 + $0x10] sm:$0xff]
    %v183 = vld [vmem:[#allocation8 + $0x18] sm:$0xff]
    %v184 = vld [vmem:[%s3] sm:$0x1]
    %v186 = vlaneseq
    %v187 = vshrl.u32 %v186, 7
    %v188 = vsub.s32 0, %v187
    %v189 = vrot.slane %v184, %v188
    %vm191 = vcmask 261120
    %v193 = vsel %vm191, %v179, 0
    %195 = vmatprep.subr.mxu0 0.0
    %196 = vmatpush1.msra.mxu0 %v180
    %197 = vmatprep.subr.mxu0 0.0
    %198 = vmatpush1.msra.mxu0 %v181
    %199 = vmatprep.subr.mxu0 0.0
    %200 = vmatpush1.msra.mxu0 %v182
    %201 = vmatprep.subr.mxu0 0.0
    %202 = vmatpush1.msra.mxu0 %v183
    %203 = vmatprep.subr.mxu0 0.0
    %204 = vmatpush1.msra.mxu0 0.0
    %205 = vmatprep.subr.mxu0 0.0
    %206 = vmatpush1.msra.mxu0 0.0
    %207 = vmatprep.subr.mxu0 0.0
    %208 = vmatpush1.msra.mxu0 0.0
    %209 = vmatprep.subr.mxu0 0.0
    %210 = vmatpush1.msra.mxu0 0.0
    %211 = vmatprep.subr.mxu0 0.0
    %212 = vmatpush1.msra.mxu0 0.0
    %213 = vmatprep.subr.mxu0 0.0
    %214 = vmatpush1.msra.mxu0 0.0
    %215 = vmatprep.subr.mxu0 0.0
    %216 = vmatpush1.msra.mxu0 0.0
    %217 = vmatprep.subr.mxu0 0.0
    %218 = vmatpush1.msra.mxu0 0.0
    %219 = vmatprep.subr.mxu0 0.0
    %220 = vmatpush1.msra.mxu0 0.0
    %221 = vmatprep.subr.mxu0 0.0
    %222 = vmatpush1.msra.mxu0 0.0
    %223 = vmatprep.subr.mxu0 0.0
    %224 = vmatpush1.msra.mxu0 0.0
    %225 = vmatprep.subr.mxu0 0.0
    %226 = vmatpush1.msra.mxu0 0.0
    %227 = vmatprep.subr.mxu0 0.0
    %228 = vmatpush1.msra.mxu0 0.0
    %229 = vmatprep.subr.mxu0 0.0
    %230 = vmatpush1.msra.mxu0 0.0
    %231 = vmatprep.subr.mxu0 0.0
    %232 = vmatpush1.msra.mxu0 0.0
    %233 = vmatprep.subr.mxu0 0.0
    %234 = vmatpush1.msra.mxu0 0.0
    %235 = vmatprep.subr.mxu0 0.0
    %236 = vmatpush1.msra.mxu0 0.0
    %237 = vmatprep.subr.mxu0 0.0
    %238 = vmatpush1.msra.mxu0 0.0
    %239 = vmatprep.subr.mxu0 0.0
    %240 = vmatpush1.msra.mxu0 0.0
    %241 = vmatprep.subr.mxu0 0.0
    %242 = vmatpush1.msra.mxu0 0.0
    %243 = vmatprep.subr.mxu0 0.0
    %244 = vmatpush1.msra.mxu0 0.0
    %245 = vmatprep.subr.mxu0 0.0
    %246 = vmatpush1.msra.mxu0 0.0
    %247 = vmatprep.subr.mxu0 0.0
    %248 = vmatpush1.msra.mxu0 0.0
    %249 = vmatprep.subr.mxu0 0.0
    %250 = vmatpush1.msra.mxu0 0.0
    %251 = vmatprep.subr.mxu0 0.0
    %252 = vmatpush1.msra.mxu0 0.0
    %253 = vmatprep.subr.mxu0 0.0
    %254 = vmatpush1.msra.mxu0 0.0
    %255 = vmatprep.subr.mxu0 0.0
    %256 = vmatpush1.msra.mxu0 0.0
    %257 = vmatprep.subr.mxu0 0.0
    %258 = vmatpush1.msra.mxu0 0.0
    %259 = vmatprep.mubr.f32.mxu0 0.0
    %260 = vmatmul.mubr.f32.gmra.mrb[0].mxu0 %v193
    %v261 = vpop.f32.mrb[0].mxu0
    %v262 = vadd.f32 %v189, %v261
    %v263 = vpop.f32.mrb[0].mxu0
    %264 = vdwg.mxu0
    %v265 = vxor.u32 %v262, 2147483648
    %v266 = vmul.f32 %v265, 1.442695
    %v267 = vpow.pop %v266
    %v268 = vadd.f32 %v267, 1.0
    %v269 = vrcp.pop %v268
    %v270 = vmul.f32 1.0, %v269
    %v271 = vtanh.pop %v262
    %v272 = vld [vmem:[#allocation9] sm:$0xff]
    %v273 = vld [vmem:[#allocation9 + $0x8] sm:$0xff]
    %v274 = vld [vmem:[#allocation9 + $0x10] sm:$0xff]
    %v275 = vld [vmem:[#allocation9 + $0x18] sm:$0xff]
    %v276 = vld [vmem:[%s5] sm:$0x1]
    %v278 = vlaneseq
    %v279 = vshrl.u32 %v278, 7
    %v280 = vsub.s32 0, %v279
    %v281 = vrot.slane %v276, %v280
    %284 = vrot.lane.b32.xlu0 %v271, 64
    %v285 = vpop.permute.xlu0 %284
    %v286 = vsel %vm191, %v285, 0
    %288 = vmatprep.subr.mxu0 0.0
    %289 = vmatpush1.msra.mxu0 %v272
    %290 = vmatprep.subr.mxu0 0.0
    %291 = vmatpush1.msra.mxu0 %v273
    %292 = vmatprep.subr.mxu0 0.0
    %293 = vmatpush1.msra.mxu0 %v274
    %294 = vmatprep.subr.mxu0 0.0
    %295 = vmatpush1.msra.mxu0 %v275
    %296 = vmatprep.subr.mxu0 0.0
    %297 = vmatpush1.msra.mxu0 0.0
    %298 = vmatprep.subr.mxu0 0.0
    %299 = vmatpush1.msra.mxu0 0.0
    %300 = vmatprep.subr.mxu0 0.0
    %301 = vmatpush1.msra.mxu0 0.0
    %302 = vmatprep.subr.mxu0 0.0
    %303 = vmatpush1.msra.mxu0 0.0
    %304 = vmatprep.subr.mxu0 0.0
    %305 = vmatpush1.msra.mxu0 0.0
    %306 = vmatprep.subr.mxu0 0.0
    %307 = vmatpush1.msra.mxu0 0.0
    %308 = vmatprep.subr.mxu0 0.0
    %309 = vmatpush1.msra.mxu0 0.0
    %310 = vmatprep.subr.mxu0 0.0
    %311 = vmatpush1.msra.mxu0 0.0
    %312 = vmatprep.subr.mxu0 0.0
    %313 = vmatpush1.msra.mxu0 0.0
    %314 = vmatprep.subr.mxu0 0.0
    %315 = vmatpush1.msra.mxu0 0.0
    %316 = vmatprep.subr.mxu0 0.0
    %317 = vmatpush1.msra.mxu0 0.0
    %318 = vmatprep.subr.mxu0 0.0
    %319 = vmatpush1.msra.mxu0 0.0
    %320 = vmatprep.subr.mxu0 0.0
    %321 = vmatpush1.msra.mxu0 0.0
    %322 = vmatprep.subr.mxu0 0.0
    %323 = vmatpush1.msra.mxu0 0.0
    %324 = vmatprep.subr.mxu0 0.0
    %325 = vmatpush1.msra.mxu0 0.0
    %326 = vmatprep.subr.mxu0 0.0
    %327 = vmatpush1.msra.mxu0 0.0
    %328 = vmatprep.subr.mxu0 0.0
    %329 = vmatpush1.msra.mxu0 0.0
    %330 = vmatprep.subr.mxu0 0.0
    %331 = vmatpush1.msra.mxu0 0.0
    %332 = vmatprep.subr.mxu0 0.0
    %333 = vmatpush1.msra.mxu0 0.0
    %334 = vmatprep.subr.mxu0 0.0
    %335 = vmatpush1.msra.mxu0 0.0
    %336 = vmatprep.subr.mxu0 0.0
    %337 = vmatpush1.msra.mxu0 0.0
    %338 = vmatprep.subr.mxu0 0.0
    %339 = vmatpush1.msra.mxu0 0.0
    %340 = vmatprep.subr.mxu0 0.0
    %341 = vmatpush1.msra.mxu0 0.0
    %342 = vmatprep.subr.mxu0 0.0
    %343 = vmatpush1.msra.mxu0 0.0
    %344 = vmatprep.subr.mxu0 0.0
    %345 = vmatpush1.msra.mxu0 0.0
    %346 = vmatprep.subr.mxu0 0.0
    %347 = vmatpush1.msra.mxu0 0.0
    %348 = vmatprep.subr.mxu0 0.0
    %349 = vmatpush1.msra.mxu0 0.0
    %350 = vmatprep.subr.mxu0 0.0
    %351 = vmatpush1.msra.mxu0 0.0
    %352 = vmatprep.mubr.f32.mxu0 0.0
    %353 = vmatmul.mubr.f32.gmra.mrb[0].mxu0 %v286
    %v354 = vpop.f32.mrb[0].mxu0
    %v355 = vadd.f32 %v281, %v354
    %v356 = vpop.f32.mrb[0].mxu0
    %357 = vdwg.mxu0
    %v358 = vmul.f32 %v355, %v270
    %360 = vrot.lane.b32.xlu0 %v270, 96
    %v361 = vpop.permute.xlu0 %360
    %364 = vrot.lane.b32.xlu0 %v358, 32
    %v365 = vpop.permute.xlu0 %364
    %v367 = vsel %vm191, %v361, %v365
    %vm368 = vcmask 523264
    %369 = vst.msk [vmem:[#allocation11] sm:$0xff] %vm368, %v367
    // Predicated region
    $region46: #{tpu_custom_call.1} parent=1 // pred_check
      _
    $region47: #{tpu_custom_call.1} parent=1 // pred_check_branch
      %371 = sbr.rel (0) target = $region49
    $region48: #{tpu_custom_call.1} parent=1 // pred_region
      %s373 = ssub.s32 128, 128
      %374 = vsyncadd [#allocation5], %s373
      %s376 = sshll.u32 [#allocation11], 4
      %s377 = int_to_ptr.vmem [resolvable:$true] %s376
      %379 = dma.vmem_to_hbm [thread:$0]  %s377, 128, %s6, [#allocation5]
    $region49: #{tpu_custom_call.1} parent=1 // pred_fallthru
      _
    // Predicated region
    $region50: #{tpu_custom_call.1} parent=1 // pred_check
      _
    $region51: #{tpu_custom_call.1} parent=1 // pred_check_branch
      %381 = sbr.rel (0) target = $region53
    $region52: #{tpu_custom_call.1} parent=1 // pred_region
      %382 = dma.done [#allocation5], 128
    $region53: #{tpu_custom_call.1} parent=1 // pred_fallthru
      _
    %383 = vsyncpa [#allocation4], 1
    %384 = vsyncpa [#allocation7], 1
    %385 = vsyncpa [#allocation10], 1
    %386 = vsyncpa [#allocation5], 1

</llo_original>
